<compile_context>
chip_gen: v7x
topology: tpu7x:2x2x1
jax: 0.10.0
libtpu: 0.0.40
codegen_flags: <defaults>
</compile_context>

<pallas_src>
import jax
import jax.numpy as jnp
from jax.experimental import pallas as pl
from jax.experimental.pallas import tpu as pltpu


def _round_up(n, m):
    return ((n + m - 1) // m) * m


def mlp_kernel(xT_ref, w1_ref, w2_ref, w3_ref, b_ref, o_ref):
    """One batch tile of the MLP, feature-major layout (batch on the lane axis).

    xT_ref : (n_in,  TB)          activations^T, batch on the 128-wide lane axis
    w1_ref : (n_h1, n_in)         PyTorch layout (out_features, in_features)
    w2_ref : (n_h2, n_h1)
    w3_ref : (1,    n_h2)
    b_ref  : (n_h1+n_h2+1, 1)     [b1; b2; b3] folded into one column
    o_ref  : (1, TB)              lane-dense logits
    """
    n_h1 = w1_ref.shape[0]
    n_h2 = w2_ref.shape[0]

    # Layer 1 (MXU): K = n_in is tiny, but the MXU has huge slack here while the VALU
    # slot binds at large TB, so the padded matmul is effectively free.
    h1 = jnp.dot(w1_ref[...], xT_ref[...], preferred_element_type=jnp.float32)
    h1 = jnp.maximum(h1 + b_ref[0:n_h1, :], 0.0)                      # (n_h1, TB)

    # Layer 2 (MXU): genuine (n_h2, n_h1) @ (n_h1, TB), f32 accumulation.
    h2 = jnp.dot(w2_ref[...], h1, preferred_element_type=jnp.float32)
    h2 = jnp.maximum(h2 + b_ref[n_h1:n_h1 + n_h2, :], 0.0)            # (n_h2, TB)

    # Layer 3 (MXU): single output row; lane-dense (1, TB) result.
    out = jnp.dot(w3_ref[...], h2, preferred_element_type=jnp.float32)
    out = out + b_ref[n_h1 + n_h2:n_h1 + n_h2 + 1, :]
    o_ref[...] = out.astype(o_ref.dtype)


def mlp_forward_feature_major(xT, params, *, tile_b=16384):
    """xT: (n_in, B) f32 -> (B,) f32.  Core entry point (no wrapper-side transpose)."""
    w1, b1, w2, b2, w3, b3 = params                      # PyTorch layouts: w (out,in), b (out,)
    n_in, B = xT.shape

    # Lane-dense batch tile: multiple of 128, capped at 32768 (v7x 64 MiB/TC budget).
    tb = max(128, min(_round_up(tile_b, 128), 32768))
    tb = min(tb, _round_up(B, 128))
    grid = pl.cdiv(B, tb)        # partial final block instead of a full-HBM-pass jnp.pad

    # Fold the three biases into one column -> one resident buffer instead of 3 tiny DMAs.
    b_all = jnp.concatenate([b1, b2, b3]).reshape(-1, 1)  # (n_h1 + n_h2 + 1, 1)

    out = pl.pallas_call(
        mlp_kernel,
        out_shape=jax.ShapeDtypeStruct((1, B), jnp.float32),
        grid=(grid,),
        in_specs=[
            pl.BlockSpec((n_in, tb), lambda i: (0, i)),   # streamed per batch tile
            pl.BlockSpec(w1.shape, lambda i: (0, 0)),     # constant block index -> fetched
            pl.BlockSpec(w2.shape, lambda i: (0, 0)),     # once, VMEM-resident across steps
            pl.BlockSpec(w3.shape, lambda i: (0, 0)),
            pl.BlockSpec(b_all.shape, lambda i: (0, 0)),
        ],
        out_specs=pl.BlockSpec((1, tb), lambda i: (0, i)),  # lane-dense output slab
        compiler_params=pltpu.CompilerParams(
            # Independent batch tiles -> shard grid across TensorCores (v7x megacore).
            dimension_semantics=("parallel",),
            # Above the v5e 16 MiB / v6e-v7x 32 MiB default scoped limits, with
            # comfortable headroom under v7x's 64 MiB physical VMEM per core.
            vmem_limit_bytes=48 * 1024 * 1024,
        ),
    )(xT, w1, w2, w3, b_all)

    return out[0]                                         # squeeze(1)


def mlp_forward(x, params, *, tile_b=16384):
    """x: (B, n_in) f32 -> (B,) f32, matching MLP.forward (trailing squeeze(1)).

    Prefer emitting x feature-major upstream and calling mlp_forward_feature_major
    directly: the transpose below is a full extra HBM read+write of x ahead of the
    kernel (kept only for API parity with the (B, n_in) PyTorch layout).
    """
    return mlp_forward_feature_major(x.T, params, tile_b=tile_b)


def init_params(key, n_in, n_h1, n_h2):
    """torch.nn.Linear-style init: U(-1/sqrt(fan_in), +1/sqrt(fan_in)), weight (out, in)."""
    def linear(key, fan_in, fan_out):
        kw, kb = jax.random.split(key)
        bound = 1.0 / jnp.sqrt(jnp.float32(fan_in))
        w = jax.random.uniform(kw, (fan_out, fan_in), jnp.float32, -bound, bound)
        b = jax.random.uniform(kb, (fan_out,), jnp.float32, -bound, bound)
        return w, b

    k1, k2, k3 = jax.random.split(key, 3)
    w1, b1 = linear(k1, n_in, n_h1)
    w2, b2 = linear(k2, n_h1, n_h2)
    w3, b3 = linear(k3, n_h2, 1)
    return (w1, b1, w2, b2, w3, b3)


if __name__ == "__main__":
    key = jax.random.PRNGKey(0)
    kx, kp = jax.random.split(key)

    B, n_in, n_h1, n_h2 = 8, 2, 32, 32
    x = jax.random.normal(kx, (B, n_in), jnp.float32)
    params = init_params(kp, n_in, n_h1, n_h2)

    y = mlp_forward(x, params)
    jax.block_until_ready(y)

    # Pure-JAX reference of the same math (PyTorch Linear semantics: x @ W.T + b),
    # at full f32 matmul precision so both sides use f32 accumulation.
    w1, b1, w2, b2, w3, b3 = params
    with jax.default_matmul_precision("highest"):
        ref = jnp.maximum(x @ w1.T + b1, 0.0)
        ref = jnp.maximum(ref @ w2.T + b2, 0.0)
        ref = (ref @ w3.T + b3)[:, 0]

    assert y.shape == (B,)
    # Both paths are full-f32; tolerance is generous only to absorb pass-ordering noise.
    assert jnp.allclose(y, ref, atol=1e-4, rtol=1e-4), "mismatch vs reference"

    print("KERNEL_OK")
</pallas_src>

<mosaic_0001>
module attributes {stable_mosaic.version = 11 : i64} {
  func.func @mlp_kernel(%arg0: i32, %arg1: memref<2x128xf32, #tpu.memory_space<vmem>>, %arg2: memref<32x2xf32, #tpu.memory_space<vmem>>, %arg3: memref<32x32xf32, #tpu.memory_space<vmem>>, %arg4: memref<1x32xf32, #tpu.memory_space<vmem>>, %arg5: memref<65x1xf32, #tpu.memory_space<vmem>>, %arg6: memref<1x128xf32, #tpu.memory_space<vmem>>) attributes {dimension_semantics = [#tpu.dimension_semantics<parallel>], iteration_bounds = array<i64: 1>, scalar_prefetch = 0 : i64, scratch_operands = 0 : i64, tpu.core_type = #tpu.core_type<tc>, window_params = [{transform_indices = @transform_0, window_bounds = array<i64: 2, 128>}, {pipeline_mode = #tpu.pipeline_mode<synchronous>, transform_indices = @transform_1, window_bounds = array<i64: 32, 2>}, {pipeline_mode = #tpu.pipeline_mode<synchronous>, transform_indices = @transform_2, window_bounds = array<i64: 32, 32>}, {pipeline_mode = #tpu.pipeline_mode<synchronous>, transform_indices = @transform_3, window_bounds = array<i64: 1, 32>}, {pipeline_mode = #tpu.pipeline_mode<synchronous>, transform_indices = @transform_4, window_bounds = array<i64: 65, 1>}, {transform_indices = @transform_5, window_bounds = array<i64: 1, 128>}]} {
    %c0 = arith.constant 0 : index
    %c0_0 = arith.constant 0 : index
    %0 = vector.load %arg2[%c0, %c0_0] : memref<32x2xf32, #tpu.memory_space<vmem>>, vector<32x2xf32>
    %c0_1 = arith.constant 0 : index
    %c0_2 = arith.constant 0 : index
    %1 = vector.load %arg1[%c0_1, %c0_2] : memref<2x128xf32, #tpu.memory_space<vmem>>, vector<2x128xf32>
    %cst = arith.constant dense<0.000000e+00> : vector<32x128xf32>
    %2 = tpu.matmul %0, %1, %cst {dimension_numbers = #tpu.dot_dimension_numbers<[1], [0], [0], [1], [0, 0, 1, 1], [], []>} : vector<32x2xf32>, vector<2x128xf32>, vector<32x128xf32> -> vector<32x128xf32>
    %c0_3 = arith.constant 0 : index
    %c0_4 = arith.constant 0 : index
    %3 = vector.load %arg5[%c0_3, %c0_4] : memref<65x1xf32, #tpu.memory_space<vmem>>, vector<32x1xf32>
    %4 = vector.broadcast %3 : vector<32x1xf32> to vector<32x128xf32>
    %5 = arith.addf %2, %4 : vector<32x128xf32>
    %cst_5 = arith.constant 0.000000e+00 : f32
    %6 = vector.broadcast %cst_5 : f32 to vector<32x128xf32>
    %7 = arith.maximumf %5, %6 : vector<32x128xf32>
    %c0_6 = arith.constant 0 : index
    %c0_7 = arith.constant 0 : index
    %8 = vector.load %arg3[%c0_6, %c0_7] : memref<32x32xf32, #tpu.memory_space<vmem>>, vector<32x32xf32>
    %cst_8 = arith.constant dense<0.000000e+00> : vector<32x128xf32>
    %9 = tpu.matmul %8, %7, %cst_8 {dimension_numbers = #tpu.dot_dimension_numbers<[1], [0], [0], [1], [0, 0, 1, 1], [], []>} : vector<32x32xf32>, vector<32x128xf32>, vector<32x128xf32> -> vector<32x128xf32>
    %c32 = arith.constant 32 : index
    %c0_9 = arith.constant 0 : index
    %10 = vector.load %arg5[%c32, %c0_9] : memref<65x1xf32, #tpu.memory_space<vmem>>, vector<32x1xf32>
    %11 = vector.broadcast %10 : vector<32x1xf32> to vector<32x128xf32>
    %12 = arith.addf %9, %11 : vector<32x128xf32>
    %cst_10 = arith.constant 0.000000e+00 : f32
    %13 = vector.broadcast %cst_10 : f32 to vector<32x128xf32>
    %14 = arith.maximumf %12, %13 : vector<32x128xf32>
    %c0_11 = arith.constant 0 : index
    %c0_12 = arith.constant 0 : index
    %15 = vector.load %arg4[%c0_11, %c0_12] : memref<1x32xf32, #tpu.memory_space<vmem>>, vector<1x32xf32>
    %cst_13 = arith.constant dense<0.000000e+00> : vector<1x128xf32>
    %16 = tpu.matmul %15, %14, %cst_13 {dimension_numbers = #tpu.dot_dimension_numbers<[1], [0], [0], [1], [0, 0, 1, 1], [], []>} : vector<1x32xf32>, vector<32x128xf32>, vector<1x128xf32> -> vector<1x128xf32>
    %c64 = arith.constant 64 : index
    %c0_14 = arith.constant 0 : index
    %17 = vector.load %arg5[%c64, %c0_14] : memref<65x1xf32, #tpu.memory_space<vmem>>, vector<1x1xf32>
    %18 = vector.broadcast %17 : vector<1x1xf32> to vector<1x128xf32>
    %19 = arith.addf %16, %18 : vector<1x128xf32>
    %c0_15 = arith.constant 0 : index
    %c0_16 = arith.constant 0 : index
    %20 = vector.load %arg6[%c0_15, %c0_16] : memref<1x128xf32, #tpu.memory_space<vmem>>, vector<1x128xf32>
    tpu.vector_store %arg6[%c0_15, %c0_16], %19 {strides = array<i32>} : memref<1x128xf32, #tpu.memory_space<vmem>>, vector<1x128xf32>,
    return
  }
  func.func @transform_0(%arg0: i32) -> (i32, i32) {
    %c0_i32 = arith.constant 0 : i32
    %c0_i32_0 = arith.constant 0 : i32
    return %c0_i32, %arg0 : i32, i32
  }
  func.func @transform_1(%arg0: i32) -> (i32, i32) {
    %c0_i32 = arith.constant 0 : i32
    %c0_i32_0 = arith.constant 0 : i32
    %c0_i32_1 = arith.constant 0 : i32
    return %c0_i32, %c0_i32_0 : i32, i32
  }
  func.func @transform_2(%arg0: i32) -> (i32, i32) {
    %c0_i32 = arith.constant 0 : i32
    %c0_i32_0 = arith.constant 0 : i32
    %c0_i32_1 = arith.constant 0 : i32
    return %c0_i32, %c0_i32_0 : i32, i32
  }
  func.func @transform_3(%arg0: i32) -> (i32, i32) {
    %c0_i32 = arith.constant 0 : i32
    %c0_i32_0 = arith.constant 0 : i32
    %c0_i32_1 = arith.constant 0 : i32
    return %c0_i32, %c0_i32_0 : i32, i32
  }
  func.func @transform_4(%arg0: i32) -> (i32, i32) {
    %c0_i32 = arith.constant 0 : i32
    %c0_i32_0 = arith.constant 0 : i32
    %c0_i32_1 = arith.constant 0 : i32
    return %c0_i32, %c0_i32_0 : i32, i32
  }
  func.func @transform_5(%arg0: i32) -> (i32, i32) {
    %c0_i32 = arith.constant 0 : i32
    %c0_i32_0 = arith.constant 0 : i32
    return %c0_i32, %arg0 : i32, i32
  }
}

</mosaic_0001>

<llo_original>
// kernel: tpu_custom_call.1
$region0: #{tpu_custom_call.1}
  #allocation0 [shape = 'u32[]', space=smem, size = 0x4, offset = 0x4, fixed_abs, tag = 'smem constant byte address 0x4 - core index']
  #allocation1 [shape = 'u32[144,128]{1,0:T(1,128)}', space=vmem, size = 0x12000, scoped, tag = 'internal scratch']
  %s0 = inlined_call_operand.vmem [shape: f32[2,8], index: 0, kind: input, shape index: {}]
  %s1 = inlined_call_operand.vmem [shape: f32[32,2], index: 1, kind: input, shape index: {}]
  %s2 = inlined_call_operand.vmem [shape: f32[32,32], index: 2, kind: input, shape index: {}]
  %s3 = inlined_call_operand.vmem [shape: f32[1,32], index: 3, kind: input, shape index: {}]
  %s4 = inlined_call_operand.vmem [shape: f32[65,1], index: 4, kind: input, shape index: {}]
  %s5 = inlined_call_operand.hbm [shape: f32[1,8], index: 5, kind: output, shape index: {}]
  %s6 = sld [smem:[#allocation0]]
  $region30: #{tpu_custom_call.1} parent=0
    _
  %s8 = ssub.s32 1, %s6
  %s9 = scalar_select 0, %s8, %s6
  $region1: #{tpu_custom_call.1} parent=0
    #allocation2 [shape = 'u8[512]{0}', space=vmem, size = 0x400, scoped, tag = 'output window, operand 0, single buffered']
    #allocation3 [shape = 's32[1]{0}', space=sflag, size = 0x4, scoped, tag = 'scoped memory for tpu_custom_call.1']
    %10 = vsyncpa [#allocation3], 0
    // Predicated region
    $region2: #{tpu_custom_call.1} parent=1 // pred_check
      _
    $region3: #{tpu_custom_call.1} parent=1 // pred_check_branch
      %12 = sbr.rel (0) target = $region5
    $region4: #{tpu_custom_call.1} parent=1 // pred_region
      _
    $region5: #{tpu_custom_call.1} parent=1 // pred_fallthru
      _
    // Predicated region
    $region6: #{tpu_custom_call.1} parent=1 // pred_check
      _
    $region7: #{tpu_custom_call.1} parent=1 // pred_check_branch
      %14 = sbr.rel (0) target = $region9
    $region8: #{tpu_custom_call.1} parent=1 // pred_region
      _
    $region9: #{tpu_custom_call.1} parent=1 // pred_fallthru
      _
    // Predicated region
    $region10: #{tpu_custom_call.1} parent=1 // pred_check
      _
    $region11: #{tpu_custom_call.1} parent=1 // pred_check_branch
      %16 = sbr.rel (0) target = $region13
    $region12: #{tpu_custom_call.1} parent=1 // pred_region
      _
    $region13: #{tpu_custom_call.1} parent=1 // pred_fallthru
      _
    // Predicated region
    $region14: #{tpu_custom_call.1} parent=1 // pred_check
      _
    $region15: #{tpu_custom_call.1} parent=1 // pred_check_branch
      %18 = sbr.rel (0) target = $region17
    $region16: #{tpu_custom_call.1} parent=1 // pred_region
      _
    $region17: #{tpu_custom_call.1} parent=1 // pred_fallthru
      _
    // Predicated region
    $region18: #{tpu_custom_call.1} parent=1 // pred_check
      _
    $region19: #{tpu_custom_call.1} parent=1 // pred_check_branch
      %20 = sbr.rel (0) target = $region21
    $region20: #{tpu_custom_call.1} parent=1 // pred_region
      _
    $region21: #{tpu_custom_call.1} parent=1 // pred_fallthru
      _
    %v21 = vld [vmem:[%s1] sm:$0xff]
    %v22 = vld [vmem:[%s1 + $0x8] sm:$0xff]
    %v23 = vld [vmem:[%s1 + $0x10] sm:$0xff]
    %v24 = vld [vmem:[%s1 + $0x18] sm:$0xff]
    %v25 = vld [vmem:[%s0] sm:$0x3]
    %v26 = vld [vmem:[%s4] sm:$0xff]
    %v27 = vld [vmem:[%s4 + $0x8] sm:$0xff]
    %v28 = vld [vmem:[%s4 + $0x10] sm:$0xff]
    %v29 = vld [vmem:[%s4 + $0x18] sm:$0xff]
    %31 = vset.pattern.permute.xlu0 0
    %32 = vperm.xlu0 %31, %v26
    %v33 = vpop.permute.xlu0 %32
    %36 = vset.pattern.permute.xlu0 0
    %37 = vperm.xlu0 %36, %v27
    %v38 = vpop.permute.xlu0 %37
    %41 = vset.pattern.permute.xlu0 0
    %42 = vperm.xlu0 %41, %v28
    %v43 = vpop.permute.xlu0 %42
    %46 = vset.pattern.permute.xlu0 0
    %47 = vperm.xlu0 %46, %v29
    %v48 = vpop.permute.xlu0 %47
    %vm50 = vcmask 15360
    %v52 = vsel %vm50, %v21, 0
    %v55 = vsel %vm50, %v22, 0
    %v58 = vsel %vm50, %v23, 0
    %v61 = vsel %vm50, %v24, 0
    %vm63 = vcmask 1041408
    %v65 = vsel %vm63, %v25, 0
    %67 = vmatprep.subr.mxu0 0.0
    %68 = vmatpush1.msra.mxu0 %v65
    %69 = vmatprep.subr.mxu0 0.0
    %70 = vmatpush1.msra.mxu0 0.0
    %71 = vmatprep.subr.mxu0 0.0
    %72 = vmatpush1.msra.mxu0 0.0
    %73 = vmatprep.subr.mxu0 0.0
    %74 = vmatpush1.msra.mxu0 0.0
    %75 = vmatprep.subr.mxu0 0.0
    %76 = vmatpush1.msra.mxu0 0.0
    %77 = vmatprep.subr.mxu0 0.0
    %78 = vmatpush1.msra.mxu0 0.0
    %79 = vmatprep.subr.mxu0 0.0
    %80 = vmatpush1.msra.mxu0 0.0
    %81 = vmatprep.subr.mxu0 0.0
    %82 = vmatpush1.msra.mxu0 0.0
    %83 = vmatprep.subr.mxu0 0.0
    %84 = vmatpush1.msra.mxu0 0.0
    %85 = vmatprep.subr.mxu0 0.0
    %86 = vmatpush1.msra.mxu0 0.0
    %87 = vmatprep.subr.mxu0 0.0
    %88 = vmatpush1.msra.mxu0 0.0
    %89 = vmatprep.subr.mxu0 0.0
    %90 = vmatpush1.msra.mxu0 0.0
    %91 = vmatprep.subr.mxu0 0.0
    %92 = vmatpush1.msra.mxu0 0.0
    %93 = vmatprep.subr.mxu0 0.0
    %94 = vmatpush1.msra.mxu0 0.0
    %95 = vmatprep.subr.mxu0 0.0
    %96 = vmatpush1.msra.mxu0 0.0
    %97 = vmatprep.subr.mxu0 0.0
    %98 = vmatpush1.msra.mxu0 0.0
    %99 = vmatprep.subr.mxu0 0.0
    %100 = vmatpush1.msra.mxu0 0.0
    %101 = vmatprep.subr.mxu0 0.0
    %102 = vmatpush1.msra.mxu0 0.0
    %103 = vmatprep.subr.mxu0 0.0
    %104 = vmatpush1.msra.mxu0 0.0
    %105 = vmatprep.subr.mxu0 0.0
    %106 = vmatpush1.msra.mxu0 0.0
    %107 = vmatprep.subr.mxu0 0.0
    %108 = vmatpush1.msra.mxu0 0.0
    %109 = vmatprep.subr.mxu0 0.0
    %110 = vmatpush1.msra.mxu0 0.0
    %111 = vmatprep.subr.mxu0 0.0
    %112 = vmatpush1.msra.mxu0 0.0
    %113 = vmatprep.subr.mxu0 0.0
    %114 = vmatpush1.msra.mxu0 0.0
    %115 = vmatprep.subr.mxu0 0.0
    %116 = vmatpush1.msra.mxu0 0.0
    %117 = vmatprep.subr.mxu0 0.0
    %118 = vmatpush1.msra.mxu0 0.0
    %119 = vmatprep.subr.mxu0 0.0
    %120 = vmatpush1.msra.mxu0 0.0
    %121 = vmatprep.subr.mxu0 0.0
    %122 = vmatpush1.msra.mxu0 0.0
    %123 = vmatprep.subr.mxu0 0.0
    %124 = vmatpush1.msra.mxu0 0.0
    %125 = vmatprep.subr.mxu0 0.0
    %126 = vmatpush1.msra.mxu0 0.0
    %127 = vmatprep.subr.mxu0 0.0
    %128 = vmatpush1.msra.mxu0 0.0
    %129 = vmatprep.subr.mxu0 0.0
    %130 = vmatpush1.msra.mxu0 0.0
    %131 = vmatprep.mubr.f32.mxu0 0.0
    %132 = vmatmul.mubr.f32.gmra.mrb[0].mxu0 %v52
    %v133 = vpop.f32.mrb[0].mxu0
    %v134 = vadd.f32 %v33, %v133
    %v135 = vpop.f32.mrb[0].mxu0
    %136 = vmatprep.mubr.f32.mxu0 0.0
    %137 = vmatmul.mubr.f32.gmra.mrb[0].mxu0 %v55
    %v138 = vpop.f32.mrb[0].mxu0
    %v139 = vadd.f32 %v38, %v138
    %v140 = vpop.f32.mrb[0].mxu0
    %141 = vmatprep.mubr.f32.mxu0 0.0
    %142 = vmatmul.mubr.f32.gmra.mrb[0].mxu0 %v58
    %v143 = vpop.f32.mrb[0].mxu0
    %v144 = vadd.f32 %v43, %v143
    %v145 = vpop.f32.mrb[0].mxu0
    %146 = vmatprep.mubr.f32.mxu0 0.0
    %147 = vmatmul.mubr.f32.gmra.mrb[0].mxu0 %v61
    %v148 = vpop.f32.mrb[0].mxu0
    %v149 = vadd.f32 %v48, %v148
    %v150 = vpop.f32.mrb[0].mxu0
    %151 = vdwg.mxu0
    %v152 = vmax.f32 %v134, 0.0
    %v153 = vmax.f32 %v139, 0.0
    %v154 = vmax.f32 %v144, 0.0
    %v155 = vmax.f32 %v149, 0.0
    %v156 = vld [vmem:[%s2] sm:$0xff]
    %v157 = vld [vmem:[%s2 + $0x8] sm:$0xff]
    %v158 = vld [vmem:[%s2 + $0x10] sm:$0xff]
    %v159 = vld [vmem:[%s2 + $0x18] sm:$0xff]
    %v160 = vld [vmem:[%s4 + $0x20] sm:$0xff]
    %v161 = vld [vmem:[%s4 + $0x28] sm:$0xff]
    %v162 = vld [vmem:[%s4 + $0x30] sm:$0xff]
    %v163 = vld [vmem:[%s4 + $0x38] sm:$0xff]
    %165 = vset.pattern.permute.xlu0 0
    %166 = vperm.xlu0 %165, %v160
    %v167 = vpop.permute.xlu0 %166
    %170 = vset.pattern.permute.xlu0 0
    %171 = vperm.xlu0 %170, %v161
    %v172 = vpop.permute.xlu0 %171
    %175 = vset.pattern.permute.xlu0 0
    %176 = vperm.xlu0 %175, %v162
    %v177 = vpop.permute.xlu0 %176
    %180 = vset.pattern.permute.xlu0 0
    %181 = vperm.xlu0 %180, %v163
    %v182 = vpop.permute.xlu0 %181
    %vm184 = vcmask 261120
    %v186 = vsel %vm184, %v156, 0
    %v189 = vsel %vm184, %v157, 0
    %v192 = vsel %vm184, %v158, 0
    %v195 = vsel %vm184, %v159, 0
    %197 = vmatprep.subr.mxu0 0.0
    %198 = vmatpush1.msra.mxu0 %v152
    %199 = vmatprep.subr.mxu0 0.0
    %200 = vmatpush1.msra.mxu0 %v153
    %201 = vmatprep.subr.mxu0 0.0
    %202 = vmatpush1.msra.mxu0 %v154
    %203 = vmatprep.subr.mxu0 0.0
    %204 = vmatpush1.msra.mxu0 %v155
    %205 = vmatprep.subr.mxu0 0.0
    %206 = vmatpush1.msra.mxu0 0.0
    %207 = vmatprep.subr.mxu0 0.0
    %208 = vmatpush1.msra.mxu0 0.0
    %209 = vmatprep.subr.mxu0 0.0
    %210 = vmatpush1.msra.mxu0 0.0
    %211 = vmatprep.subr.mxu0 0.0
    %212 = vmatpush1.msra.mxu0 0.0
    %213 = vmatprep.subr.mxu0 0.0
    %214 = vmatpush1.msra.mxu0 0.0
    %215 = vmatprep.subr.mxu0 0.0
    %216 = vmatpush1.msra.mxu0 0.0
    %217 = vmatprep.subr.mxu0 0.0
    %218 = vmatpush1.msra.mxu0 0.0
    %219 = vmatprep.subr.mxu0 0.0
    %220 = vmatpush1.msra.mxu0 0.0
    %221 = vmatprep.subr.mxu0 0.0
    %222 = vmatpush1.msra.mxu0 0.0
    %223 = vmatprep.subr.mxu0 0.0
    %224 = vmatpush1.msra.mxu0 0.0
    %225 = vmatprep.subr.mxu0 0.0
    %226 = vmatpush1.msra.mxu0 0.0
    %227 = vmatprep.subr.mxu0 0.0
    %228 = vmatpush1.msra.mxu0 0.0
    %229 = vmatprep.subr.mxu0 0.0
    %230 = vmatpush1.msra.mxu0 0.0
    %231 = vmatprep.subr.mxu0 0.0
    %232 = vmatpush1.msra.mxu0 0.0
    %233 = vmatprep.subr.mxu0 0.0
    %234 = vmatpush1.msra.mxu0 0.0
    %235 = vmatprep.subr.mxu0 0.0
    %236 = vmatpush1.msra.mxu0 0.0
    %237 = vmatprep.subr.mxu0 0.0
    %238 = vmatpush1.msra.mxu0 0.0
    %239 = vmatprep.subr.mxu0 0.0
    %240 = vmatpush1.msra.mxu0 0.0
    %241 = vmatprep.subr.mxu0 0.0
    %242 = vmatpush1.msra.mxu0 0.0
    %243 = vmatprep.subr.mxu0 0.0
    %244 = vmatpush1.msra.mxu0 0.0
    %245 = vmatprep.subr.mxu0 0.0
    %246 = vmatpush1.msra.mxu0 0.0
    %247 = vmatprep.subr.mxu0 0.0
    %248 = vmatpush1.msra.mxu0 0.0
    %249 = vmatprep.subr.mxu0 0.0
    %250 = vmatpush1.msra.mxu0 0.0
    %251 = vmatprep.subr.mxu0 0.0
    %252 = vmatpush1.msra.mxu0 0.0
    %253 = vmatprep.subr.mxu0 0.0
    %254 = vmatpush1.msra.mxu0 0.0
    %255 = vmatprep.subr.mxu0 0.0
    %256 = vmatpush1.msra.mxu0 0.0
    %257 = vmatprep.subr.mxu0 0.0
    %258 = vmatpush1.msra.mxu0 0.0
    %259 = vmatprep.subr.mxu0 0.0
    %260 = vmatpush1.msra.mxu0 0.0
    %261 = vmatprep.mubr.f32.mxu0 0.0
    %262 = vmatmul.mubr.f32.gmra.mrb[0].mxu0 %v186
    %v263 = vpop.f32.mrb[0].mxu0
    %v264 = vadd.f32 %v167, %v263
    %v265 = vpop.f32.mrb[0].mxu0
    %266 = vmatprep.mubr.f32.mxu0 0.0
    %267 = vmatmul.mubr.f32.gmra.mrb[0].mxu0 %v189
    %v268 = vpop.f32.mrb[0].mxu0
    %v269 = vadd.f32 %v172, %v268
    %v270 = vpop.f32.mrb[0].mxu0
    %271 = vmatprep.mubr.f32.mxu0 0.0
    %272 = vmatmul.mubr.f32.gmra.mrb[0].mxu0 %v192
    %v273 = vpop.f32.mrb[0].mxu0
    %v274 = vadd.f32 %v177, %v273
    %v275 = vpop.f32.mrb[0].mxu0
    %276 = vmatprep.mubr.f32.mxu0 0.0
    %277 = vmatmul.mubr.f32.gmra.mrb[0].mxu0 %v195
    %v278 = vpop.f32.mrb[0].mxu0
    %v279 = vadd.f32 %v182, %v278
    %v280 = vpop.f32.mrb[0].mxu0
    %281 = vdwg.mxu0
    %v282 = vmax.f32 %v264, 0.0
    %v283 = vmax.f32 %v269, 0.0
    %v284 = vmax.f32 %v274, 0.0
    %v285 = vmax.f32 %v279, 0.0
    %v286 = vld [vmem:[%s3] sm:$0x1]
    %v287 = vld [vmem:[%s4 + $0x40] sm:$0x1]
    %289 = vset.pattern.permute.xlu0 0
    %290 = vperm.xlu0 %289, %v287
    %v291 = vpop.permute.xlu0 %290
    %v294 = vsel %vm184, %v286, 0
    %296 = vmatprep.subr.mxu0 0.0
    %297 = vmatpush1.msra.mxu0 %v282
    %298 = vmatprep.subr.mxu0 0.0
    %299 = vmatpush1.msra.mxu0 %v283
    %300 = vmatprep.subr.mxu0 0.0
    %301 = vmatpush1.msra.mxu0 %v284
    %302 = vmatprep.subr.mxu0 0.0
    %303 = vmatpush1.msra.mxu0 %v285
    %304 = vmatprep.subr.mxu0 0.0
    %305 = vmatpush1.msra.mxu0 0.0
    %306 = vmatprep.subr.mxu0 0.0
    %307 = vmatpush1.msra.mxu0 0.0
    %308 = vmatprep.subr.mxu0 0.0
    %309 = vmatpush1.msra.mxu0 0.0
    %310 = vmatprep.subr.mxu0 0.0
    %311 = vmatpush1.msra.mxu0 0.0
    %312 = vmatprep.subr.mxu0 0.0
    %313 = vmatpush1.msra.mxu0 0.0
    %314 = vmatprep.subr.mxu0 0.0
    %315 = vmatpush1.msra.mxu0 0.0
    %316 = vmatprep.subr.mxu0 0.0
    %317 = vmatpush1.msra.mxu0 0.0
    %318 = vmatprep.subr.mxu0 0.0
    %319 = vmatpush1.msra.mxu0 0.0
    %320 = vmatprep.subr.mxu0 0.0
    %321 = vmatpush1.msra.mxu0 0.0
    %322 = vmatprep.subr.mxu0 0.0
    %323 = vmatpush1.msra.mxu0 0.0
    %324 = vmatprep.subr.mxu0 0.0
    %325 = vmatpush1.msra.mxu0 0.0
    %326 = vmatprep.subr.mxu0 0.0
    %327 = vmatpush1.msra.mxu0 0.0
    %328 = vmatprep.subr.mxu0 0.0
    %329 = vmatpush1.msra.mxu0 0.0
    %330 = vmatprep.subr.mxu0 0.0
    %331 = vmatpush1.msra.mxu0 0.0
    %332 = vmatprep.subr.mxu0 0.0
    %333 = vmatpush1.msra.mxu0 0.0
    %334 = vmatprep.subr.mxu0 0.0
    %335 = vmatpush1.msra.mxu0 0.0
    %336 = vmatprep.subr.mxu0 0.0
    %337 = vmatpush1.msra.mxu0 0.0
    %338 = vmatprep.subr.mxu0 0.0
    %339 = vmatpush1.msra.mxu0 0.0
    %340 = vmatprep.subr.mxu0 0.0
    %341 = vmatpush1.msra.mxu0 0.0
    %342 = vmatprep.subr.mxu0 0.0
    %343 = vmatpush1.msra.mxu0 0.0
    %344 = vmatprep.subr.mxu0 0.0
    %345 = vmatpush1.msra.mxu0 0.0
    %346 = vmatprep.subr.mxu0 0.0
    %347 = vmatpush1.msra.mxu0 0.0
    %348 = vmatprep.subr.mxu0 0.0
    %349 = vmatpush1.msra.mxu0 0.0
    %350 = vmatprep.subr.mxu0 0.0
    %351 = vmatpush1.msra.mxu0 0.0
    %352 = vmatprep.subr.mxu0 0.0
    %353 = vmatpush1.msra.mxu0 0.0
    %354 = vmatprep.subr.mxu0 0.0
    %355 = vmatpush1.msra.mxu0 0.0
    %356 = vmatprep.subr.mxu0 0.0
    %357 = vmatpush1.msra.mxu0 0.0
    %358 = vmatprep.subr.mxu0 0.0
    %359 = vmatpush1.msra.mxu0 0.0
    %360 = vmatprep.mubr.f32.mxu0 0.0
    %361 = vmatmul.mubr.f32.gmra.mrb[0].mxu0 %v294
    %v362 = vpop.f32.mrb[0].mxu0
    %v363 = vadd.f32 %v291, %v362
    %v364 = vpop.f32.mrb[0].mxu0
    %365 = vdwg.mxu0
    %366 = vst [vmem:[#allocation2] sm:$0x1] %v363
    // Predicated region
    $region22: #{tpu_custom_call.1} parent=1 // pred_check
      _
    $region23: #{tpu_custom_call.1} parent=1 // pred_check_branch
      %368 = sbr.rel (0) target = $region25
    $region24: #{tpu_custom_call.1} parent=1 // pred_region
      %s370 = ssub.s32 16, 16
      %371 = vsyncadd [#allocation3], %s370
      %s373 = sshll.u32 [#allocation2], 4
      %s374 = int_to_ptr.vmem [resolvable:$true] %s373
      %376 = dma.vmem_to_hbm [thread:$0]  %s374, 16, %s5, [#allocation3]
    $region25: #{tpu_custom_call.1} parent=1 // pred_fallthru
      _
    // Predicated region
    $region26: #{tpu_custom_call.1} parent=1 // pred_check
      _
    $region27: #{tpu_custom_call.1} parent=1 // pred_check_branch
      %378 = sbr.rel (0) target = $region29
    $region28: #{tpu_custom_call.1} parent=1 // pred_region
      %379 = dma.done [#allocation3], 16
    $region29: #{tpu_custom_call.1} parent=1 // pred_fallthru
      _
    %380 = vsyncpa [#allocation3], 1

</llo_original>
